<compile_context>
chip_gen: v7x
topology: tpu7x:2x2x1
jax: 0.10.0
libtpu: 0.0.40
codegen_flags: <defaults>
</compile_context>

<pallas_src>
import jax
import jax.numpy as jnp
from jax.experimental import pallas as pl
from jax.experimental.pallas import tpu as pltpu

NEG_SLOPE = 0.01  # nn.LeakyReLU default negative_slope


def _leaky_relu(x):
    return jnp.where(x > 0, x, NEG_SLOPE * x)


def _round_up(n, m):
    return ((n + m - 1) // m) * m


def _pick_tile(batch, tm_req):
    """Pick the batch tile: a multiple of the f32 sublane tile (8), large
    enough to amortize per-step overhead, but clamped so the grid has >= 2
    steps whenever the batch allows it (keeps both v7x TensorCores busy and
    gives the pipeline something to overlap)."""
    tm_req = max(8, _round_up(tm_req, 8))
    if batch <= 8:
        return 8
    half = _round_up((batch + 1) // 2, 8)
    return min(tm_req, half)


def mapper_kernel(x_ref, w1_ref, b1_ref, w2_ref, b2_ref, o_ref):
    # Linear 1 + LeakyReLU (f32 accumulate on MXU).
    h = jnp.dot(x_ref[...], w1_ref[...], preferred_element_type=jnp.float32)
    h = _leaky_relu(h + b1_ref[...])
    # Linear 2 + LeakyReLU (intermediate stays f32; accumulate in f32).
    y = jnp.dot(h, w2_ref[...], preferred_element_type=jnp.float32)
    y = _leaky_relu(y + b2_ref[...])
    o_ref[...] = y.astype(o_ref.dtype)


def mapper_forward(x, w1, b1, w2, b2, *, tm=2048):
    """x: (B, input_size); w1: (input_size, hidden); b1: (1, hidden);
    w2: (hidden, out_dim); b2: (1, out_dim). Returns (B, out_dim)."""
    B, in_dim = x.shape
    hidden = w1.shape[1]
    out_dim = w2.shape[1]
    itemsize = jnp.dtype(x.dtype).itemsize

    tm = _pick_tile(B, tm)
    grid = (pl.cdiv(B, tm),)

    flops = 2 * B * (in_dim * hidden + hidden * out_dim)
    bytes_accessed = (
        B * in_dim * itemsize            # x
        + in_dim * hidden * itemsize     # w1
        + hidden * itemsize              # b1
        + hidden * out_dim * itemsize    # w2
        + out_dim * itemsize             # b2
        + B * out_dim * itemsize         # y
    )

    return pl.pallas_call(
        mapper_kernel,
        out_shape=jax.ShapeDtypeStruct((B, out_dim), x.dtype),
        grid_spec=pltpu.PrefetchScalarGridSpec(
            num_scalar_prefetch=0,
            grid=grid,
            in_specs=[
                # x: tiled along batch, pipelined/double-buffered per step.
                # Last (partial) block relies on Pallas masking: OOB rows are
                # undefined on read and their output stores are dropped.
                pl.BlockSpec((tm, in_dim), lambda i: (i, 0)),
                # Weights / biases: constant index_map -> VMEM-resident.
                pl.BlockSpec((in_dim, hidden), lambda i: (0, 0)),
                pl.BlockSpec((1, hidden), lambda i: (0, 0)),
                pl.BlockSpec((hidden, out_dim), lambda i: (0, 0)),
                pl.BlockSpec((1, out_dim), lambda i: (0, 0)),
            ],
            out_specs=pl.BlockSpec((tm, out_dim), lambda i: (i, 0)),
        ),
        compiler_params=pltpu.CompilerParams(
            dimension_semantics=("parallel",),
        ),
        cost_estimate=pl.CostEstimate(
            flops=flops, transcendentals=0, bytes_accessed=bytes_accessed),
    )(x, w1, b1, w2, b2)


def mapper_reference(x, w1, b1, w2, b2):
    h = _leaky_relu(x @ w1 + b1)
    return _leaky_relu(h @ w2 + b2)


if __name__ == "__main__":
    # Module hyperparams (small, consistent with the forward):
    input_size = 32
    token_length = 8
    output_n = 16
    hidden = token_length * output_n // 2   # 64
    out_dim = token_length * output_n       # 128

    key = jax.random.PRNGKey(0)
    kx, k1, k2, k3, k4 = jax.random.split(key, 5)

    # Deterministic parameter init (PyTorch-Linear-like uniform scaling).
    lim1 = 1.0 / (input_size ** 0.5)
    w1 = jax.random.uniform(k1, (input_size, hidden), jnp.float32, -lim1, lim1)
    b1 = jax.random.uniform(k2, (1, hidden), jnp.float32, -lim1, lim1)
    lim2 = 1.0 / (hidden ** 0.5)
    w2 = jax.random.uniform(k3, (hidden, out_dim), jnp.float32, -lim2, lim2)
    b2 = jax.random.uniform(k4, (1, out_dim), jnp.float32, -lim2, lim2)

    # Case 1: batch=24 -> tm auto-clamped to 16, 2 grid steps, ragged last
    # tile (no host-side padding, no output slicing).
    batch = 24
    x = jax.random.normal(kx, (batch, input_size), dtype=jnp.float32)
    y = jax.block_until_ready(mapper_forward(x, w1, b1, w2, b2))
    y_ref = mapper_reference(x, w1, b1, w2, b2)
    assert y.shape == (batch, out_dim)
    assert jnp.allclose(y, y_ref, atol=1e-5, rtol=1e-5), "mismatch (case 1)"

    # Case 2: batch=10 -> tm=8, 2 grid steps, last tile only 2 valid rows.
    batch2 = 10
    x2 = jax.random.normal(kx, (batch2, input_size), dtype=jnp.float32)
    y2 = jax.block_until_ready(mapper_forward(x2, w1, b1, w2, b2))
    y2_ref = mapper_reference(x2, w1, b1, w2, b2)
    assert y2.shape == (batch2, out_dim)
    assert jnp.allclose(y2, y2_ref, atol=1e-5, rtol=1e-5), "mismatch (case 2)"

    print("KERNEL_OK")
</pallas_src>

<mosaic_0001>
module attributes {stable_mosaic.version = 11 : i64} {
  func.func @mapper_kernel(%arg0: i32, %arg1: memref<16x32xf32, #tpu.memory_space<vmem>>, %arg2: memref<32x64xf32, #tpu.memory_space<vmem>>, %arg3: memref<1x64xf32, #tpu.memory_space<vmem>>, %arg4: memref<64x128xf32, #tpu.memory_space<vmem>>, %arg5: memref<1x128xf32, #tpu.memory_space<vmem>>, %arg6: memref<16x128xf32, #tpu.memory_space<vmem>>) attributes {dimension_semantics = [#tpu.dimension_semantics<parallel>], iteration_bounds = array<i64: 2>, scalar_prefetch = 0 : i64, scratch_operands = 0 : i64, tpu.core_type = #tpu.core_type<tc>, window_params = [{transform_indices = @transform_0, window_bounds = array<i64: 16, 32>}, {pipeline_mode = #tpu.pipeline_mode<synchronous>, transform_indices = @transform_1, window_bounds = array<i64: 32, 64>}, {pipeline_mode = #tpu.pipeline_mode<synchronous>, transform_indices = @transform_2, window_bounds = array<i64: 1, 64>}, {pipeline_mode = #tpu.pipeline_mode<synchronous>, transform_indices = @transform_3, window_bounds = array<i64: 64, 128>}, {pipeline_mode = #tpu.pipeline_mode<synchronous>, transform_indices = @transform_4, window_bounds = array<i64: 1, 128>}, {transform_indices = @transform_5, window_bounds = array<i64: 16, 128>}]} {
    %c0 = arith.constant 0 : index
    %c0_0 = arith.constant 0 : index
    %0 = vector.load %arg1[%c0, %c0_0] : memref<16x32xf32, #tpu.memory_space<vmem>>, vector<16x32xf32>
    %c0_1 = arith.constant 0 : index
    %c0_2 = arith.constant 0 : index
    %1 = vector.load %arg2[%c0_1, %c0_2] : memref<32x64xf32, #tpu.memory_space<vmem>>, vector<32x64xf32>
    %cst = arith.constant dense<0.000000e+00> : vector<16x64xf32>
    %2 = tpu.matmul %0, %1, %cst {dimension_numbers = #tpu.dot_dimension_numbers<[1], [0], [0], [1], [0, 0, 1, 1], [], []>} : vector<16x32xf32>, vector<32x64xf32>, vector<16x64xf32> -> vector<16x64xf32>
    %c0_3 = arith.constant 0 : index
    %c0_4 = arith.constant 0 : index
    %3 = vector.load %arg3[%c0_3, %c0_4] : memref<1x64xf32, #tpu.memory_space<vmem>>, vector<1x64xf32>
    %4 = vector.broadcast %3 : vector<1x64xf32> to vector<16x64xf32>
    %5 = arith.addf %2, %4 : vector<16x64xf32>
    %cst_5 = arith.constant 0.000000e+00 : f32
    %6 = vector.broadcast %cst_5 : f32 to vector<16x64xf32>
    %7 = arith.cmpf ogt, %5, %6 : vector<16x64xf32>
    %cst_6 = arith.constant 0.00999999977 : f32
    %8 = vector.broadcast %cst_6 : f32 to vector<16x64xf32>
    %9 = arith.mulf %8, %5 : vector<16x64xf32>
    %10 = arith.select %7, %5, %9 : vector<16x64xi1>, vector<16x64xf32>
    %c0_7 = arith.constant 0 : index
    %c0_8 = arith.constant 0 : index
    %11 = vector.load %arg4[%c0_7, %c0_8] : memref<64x128xf32, #tpu.memory_space<vmem>>, vector<64x128xf32>
    %cst_9 = arith.constant dense<0.000000e+00> : vector<16x128xf32>
    %12 = tpu.matmul %10, %11, %cst_9 {dimension_numbers = #tpu.dot_dimension_numbers<[1], [0], [0], [1], [0, 0, 1, 1], [], []>} : vector<16x64xf32>, vector<64x128xf32>, vector<16x128xf32> -> vector<16x128xf32>
    %c0_10 = arith.constant 0 : index
    %c0_11 = arith.constant 0 : index
    %13 = vector.load %arg5[%c0_10, %c0_11] : memref<1x128xf32, #tpu.memory_space<vmem>>, vector<1x128xf32>
    %14 = vector.broadcast %13 : vector<1x128xf32> to vector<16x128xf32>
    %15 = arith.addf %12, %14 : vector<16x128xf32>
    %cst_12 = arith.constant 0.000000e+00 : f32
    %16 = vector.broadcast %cst_12 : f32 to vector<16x128xf32>
    %17 = arith.cmpf ogt, %15, %16 : vector<16x128xf32>
    %cst_13 = arith.constant 0.00999999977 : f32
    %18 = vector.broadcast %cst_13 : f32 to vector<16x128xf32>
    %19 = arith.mulf %18, %15 : vector<16x128xf32>
    %20 = arith.select %17, %15, %19 : vector<16x128xi1>, vector<16x128xf32>
    %c0_14 = arith.constant 0 : index
    %c0_15 = arith.constant 0 : index
    %21 = vector.load %arg6[%c0_14, %c0_15] : memref<16x128xf32, #tpu.memory_space<vmem>>, vector<16x128xf32>
    tpu.vector_store %arg6[%c0_14, %c0_15], %20 {strides = array<i32>} : memref<16x128xf32, #tpu.memory_space<vmem>>, vector<16x128xf32>,
    return
  }
  func.func @transform_0(%arg0: i32) -> (i32, i32) {
    %c0_i32 = arith.constant 0 : i32
    %c0_i32_0 = arith.constant 0 : i32
    return %arg0, %c0_i32 : i32, i32
  }
  func.func @transform_1(%arg0: i32) -> (i32, i32) {
    %c0_i32 = arith.constant 0 : i32
    %c0_i32_0 = arith.constant 0 : i32
    %c0_i32_1 = arith.constant 0 : i32
    return %c0_i32, %c0_i32_0 : i32, i32
  }
  func.func @transform_2(%arg0: i32) -> (i32, i32) {
    %c0_i32 = arith.constant 0 : i32
    %c0_i32_0 = arith.constant 0 : i32
    %c0_i32_1 = arith.constant 0 : i32
    return %c0_i32, %c0_i32_0 : i32, i32
  }
  func.func @transform_3(%arg0: i32) -> (i32, i32) {
    %c0_i32 = arith.constant 0 : i32
    %c0_i32_0 = arith.constant 0 : i32
    %c0_i32_1 = arith.constant 0 : i32
    return %c0_i32, %c0_i32_0 : i32, i32
  }
  func.func @transform_4(%arg0: i32) -> (i32, i32) {
    %c0_i32 = arith.constant 0 : i32
    %c0_i32_0 = arith.constant 0 : i32
    %c0_i32_1 = arith.constant 0 : i32
    return %c0_i32, %c0_i32_0 : i32, i32
  }
  func.func @transform_5(%arg0: i32) -> (i32, i32) {
    %c0_i32 = arith.constant 0 : i32
    %c0_i32_0 = arith.constant 0 : i32
    return %arg0, %c0_i32 : i32, i32
  }
}

</mosaic_0001>

<llo_original>
// kernel: tpu_custom_call.1
$region0: #{tpu_custom_call.1}
  #allocation0 [shape = 'u32[]', space=smem, size = 0x4, offset = 0x4, fixed_abs, tag = 'smem constant byte address 0x4 - core index']
  #allocation1 [shape = 'u32[144,128]{1,0:T(1,128)}', space=vmem, size = 0x12000, scoped, tag = 'internal scratch']
  %s0 = inlined_call_operand.hbm [shape: f32[24,32], index: 0, kind: input, shape index: {}]
  %s1 = inlined_call_operand.hbm [shape: f32[32,64], index: 1, kind: input, shape index: {}]
  %s2 = inlined_call_operand.vmem [shape: f32[1,64], index: 2, kind: input, shape index: {}]
  %s3 = inlined_call_operand.hbm [shape: f32[64,128], index: 3, kind: input, shape index: {}]
  %s4 = inlined_call_operand.vmem [shape: f32[1,128], index: 4, kind: input, shape index: {}]
  %s5 = inlined_call_operand.hbm [shape: f32[24,128], index: 5, kind: output, shape index: {}]
  %s6 = sld [smem:[#allocation0]]
  $region65: #{tpu_custom_call.1} parent=0
    _
  %s8 = ssub.s32 1, %s6
  %s9 = scalar_select 0, %s8, %s6
  $region1: #{tpu_custom_call.1} parent=0
    #allocation2 [shape = 'u8[16384]{0}', space=vmem, size = 0x4000, scoped, tag = 'input window, operand 0']
    #allocation3 [shape = 's32[2]{0}', space=sflag, size = 0x8, scoped, tag = 'scoped memory for tpu_custom_call.1']
    #allocation4 [shape = 's32[2]{0}', space=sflag, size = 0x8, scoped, tag = 'scoped memory for tpu_custom_call.1']
    #allocation5 [shape = 'u8[16384]{0}', space=vmem, size = 0x4000, scoped, tag = 'input window, operand 1, single buffered']
    #allocation6 [shape = 's32[1]{0}', space=sflag, size = 0x4, scoped, tag = 'scoped memory for tpu_custom_call.1']
    #allocation7 [shape = 'u8[32768]{0}', space=vmem, size = 0x8000, scoped, tag = 'input window, operand 3, single buffered']
    #allocation8 [shape = 'u8[16384]{0}', space=vmem, size = 0x4000, scoped, tag = 'output window, operand 0']
    %10 = vsyncpa [#allocation3], 0
    %s11 = scalar_lea.sflag [#allocation3], 1
    %12 = vsyncpa %s11, 0
    %13 = vsyncpa [#allocation6], 0
    %14 = vsyncpa [#allocation4], 0
    %s15 = scalar_lea.sflag [#allocation4], 1
    %16 = vsyncpa %s15, 0
    loop: start=0, step=1, limit=4
    $region2: #{tpu_custom_call.1} parent=1 // loop_pre_header
      _
    $region3: #{tpu_custom_call.1} parent=1 // loop_header
      %s18 = sphi 0, %s22
      %p19 = scmp.ge.s32.totalorder %s18, 4
      %s28 = sphi 0, %s30
      %s31 = sphi 0, %s28
      %s32 = sphi 0, %s31
      %s48 = sphi 0, %s32
      %s52 = sphi 0, %s52
      %s54 = sphi 0, %s52
      %s55 = sphi 0, %s54
      %s69 = sphi 0, %s55
      %s73 = sphi 0, %s73
      %s75 = sphi 0, %s73
      %s76 = sphi 0, %s75
      %s90 = sphi 0, %s76
      %s94 = sphi 0, %s94
      %s96 = sphi 0, %s94
      %s97 = sphi 0, %s96
      %s111 = sphi 0, %s97
      %s115 = sphi 0, %s115
      %s117 = sphi 0, %s115
      %s118 = sphi 0, %s117
      %s132 = sphi 0, %s118
      %s138 = sphi 0, %s140
      %s141 = sphi 0, %s138
      %s142 = sphi 0, %s141
      %s158 = sphi 0, %s142
    $region4: #{tpu_custom_call.1} parent=1 // loop_header_branch
      %21 = sbr.rel (%p19) target = $region8
    $region5: #{tpu_custom_call.1} parent=1 // loop_body
      %s23 = ssub.s32 %s18, 1
      %s24 = ssub.s32 %s18, 2
      %s25 = sadd.s32 %s18, 1
      %s26 = ssub.s32 %s18, %s25
      %p27 = scmp.eq.s32.totalorder %s26, 0
      %s29 = sadd.s32 %s28, 1
      %s30 = scalar_select %p27, %s28, %s29
      %p33 = pneg %p27
      %p34 = scmp.eq.s32.totalorder %s18, 1
      %p35 = por %p33, %p34
      %p36 = scmp.ne.s32.totalorder %s28, %s31
      %p37 = scmp.eq.s32.totalorder %s18, 0
      %p38 = por %p36, %p37
      %p39 = scmp.ne.s32.totalorder %s28, %s31
      %p40 = scmp.eq.s32.totalorder %s23, 1
      %p41 = por %p39, %p40
      %p42 = scmp.ne.s32.totalorder %s31, %s32
      %p43 = scmp.eq.s32.totalorder %s23, 0
      %p44 = por %p42, %p43
      %p45 = scmp.ne.s32.totalorder %s31, %s32
      %p46 = scmp.eq.s32.totalorder %s24, 1
      %p47 = por %p45, %p46
      %p49 = scmp.ne.s32.totalorder %s32, %s48
      %p50 = scmp.eq.s32.totalorder %s24, 0
      %p51 = por %p49, %p50
      %s53 = sadd.s32 %s52, 1
      %p56 = scmp.eq.s32.totalorder %s18, 1
      %p57 = scmp.ne.s32.totalorder %s52, %s54
      %p58 = scmp.eq.s32.totalorder %s18, 0
      %p59 = por %p57, %p58
      %p60 = scmp.ne.s32.totalorder %s52, %s54
      %p61 = scmp.eq.s32.totalorder %s23, 1
      %p62 = por %p60, %p61
      %p63 = scmp.ne.s32.totalorder %s54, %s55
      %p64 = scmp.eq.s32.totalorder %s23, 0
      %p65 = por %p63, %p64
      %p66 = scmp.ne.s32.totalorder %s54, %s55
      %p67 = scmp.eq.s32.totalorder %s24, 1
      %p68 = por %p66, %p67
      %p70 = scmp.ne.s32.totalorder %s55, %s69
      %p71 = scmp.eq.s32.totalorder %s24, 0
      %p72 = por %p70, %p71
      %s74 = sadd.s32 %s73, 1
      %p77 = scmp.eq.s32.totalorder %s18, 1
      %p78 = scmp.ne.s32.totalorder %s73, %s75
      %p79 = scmp.eq.s32.totalorder %s18, 0
      %p80 = por %p78, %p79
      %p81 = scmp.ne.s32.totalorder %s73, %s75
      %p82 = scmp.eq.s32.totalorder %s23, 1
      %p83 = por %p81, %p82
      %p84 = scmp.ne.s32.totalorder %s75, %s76
      %p85 = scmp.eq.s32.totalorder %s23, 0
      %p86 = por %p84, %p85
      %p87 = scmp.ne.s32.totalorder %s75, %s76
      %p88 = scmp.eq.s32.totalorder %s24, 1
      %p89 = por %p87, %p88
      %p91 = scmp.ne.s32.totalorder %s76, %s90
      %p92 = scmp.eq.s32.totalorder %s24, 0
      %p93 = por %p91, %p92
      %s95 = sadd.s32 %s94, 1
      %p98 = scmp.eq.s32.totalorder %s18, 1
      %p99 = scmp.ne.s32.totalorder %s94, %s96
      %p100 = scmp.eq.s32.totalorder %s18, 0
      %p101 = por %p99, %p100
      %p102 = scmp.ne.s32.totalorder %s94, %s96
      %p103 = scmp.eq.s32.totalorder %s23, 1
      %p104 = por %p102, %p103
      %p105 = scmp.ne.s32.totalorder %s96, %s97
      %p106 = scmp.eq.s32.totalorder %s23, 0
      %p107 = por %p105, %p106
      %p108 = scmp.ne.s32.totalorder %s96, %s97
      %p109 = scmp.eq.s32.totalorder %s24, 1
      %p110 = por %p108, %p109
      %p112 = scmp.ne.s32.totalorder %s97, %s111
      %p113 = scmp.eq.s32.totalorder %s24, 0
      %p114 = por %p112, %p113
      %s116 = sadd.s32 %s115, 1
      %p119 = scmp.eq.s32.totalorder %s18, 1
      %p120 = scmp.ne.s32.totalorder %s115, %s117
      %p121 = scmp.eq.s32.totalorder %s18, 0
      %p122 = por %p120, %p121
      %p123 = scmp.ne.s32.totalorder %s115, %s117
      %p124 = scmp.eq.s32.totalorder %s23, 1
      %p125 = por %p123, %p124
      %p126 = scmp.ne.s32.totalorder %s117, %s118
      %p127 = scmp.eq.s32.totalorder %s23, 0
      %p128 = por %p126, %p127
      %p129 = scmp.ne.s32.totalorder %s117, %s118
      %p130 = scmp.eq.s32.totalorder %s24, 1
      %p131 = por %p129, %p130
      %p133 = scmp.ne.s32.totalorder %s118, %s132
      %p134 = scmp.eq.s32.totalorder %s24, 0
      %p135 = por %p133, %p134
      %s136 = ssub.s32 %s18, %s25
      %p137 = scmp.eq.s32.totalorder %s136, 0
      %s139 = sadd.s32 %s138, 1
      %s140 = scalar_select %p137, %s138, %s139
      %p143 = pneg %p137
      %p144 = scmp.eq.s32.totalorder %s18, 1
      %p145 = por %p143, %p144
      %p146 = scmp.ne.s32.totalorder %s138, %s141
      %p147 = scmp.eq.s32.totalorder %s18, 0
      %p148 = por %p146, %p147
      %p149 = scmp.ne.s32.totalorder %s138, %s141
      %p150 = scmp.eq.s32.totalorder %s23, 1
      %p151 = por %p149, %p150
      %p152 = scmp.ne.s32.totalorder %s141, %s142
      %p153 = scmp.eq.s32.totalorder %s23, 0
      %p154 = por %p152, %p153
      %p155 = scmp.ne.s32.totalorder %s141, %s142
      %p156 = scmp.eq.s32.totalorder %s24, 1
      %p157 = por %p155, %p156
      %p159 = scmp.ne.s32.totalorder %s142, %s158
      %p160 = scmp.eq.s32.totalorder %s24, 0
      %p161 = por %p159, %p160
      %p162 = scmp.le.s32.totalorder 1, %s18
      %p163 = scmp.lt.s32.totalorder %s18, 3
      %p164 = pnand %p162, %p163
      %p165 = pneg %p164
      // Predicated region
      $region9: #{tpu_custom_call.1} parent=5 // pred_check
        _
      $region10: #{tpu_custom_call.1} parent=5 // pred_check_branch
        %167 = sbr.rel (%p164) target = $region12
      $region11: #{tpu_custom_call.1} parent=5 // pred_region
        %s168 = ssub.s32 %s18, 1
        // Predicated region
        $region13: #{tpu_custom_call.1} parent=11 // pred_check
          %p169 = pneg %p65
        $region14: #{tpu_custom_call.1} parent=11 // pred_check_branch
          %171 = sbr.rel (%p169) target = $region16
        $region15: #{tpu_custom_call.1} parent=11 // pred_region
          %s173 = ssub.s32 512, 512
          %174 = vsyncadd [#allocation6], %s173
          %s175 = sshll.u32 [#allocation5], 4
          %s176 = int_to_ptr.vmem [resolvable:$true] %s175
          %181 = dma.hbm_to_vmem [thread:$0]  %s1, 512, %s176, [#allocation6], 128, 128, 8
        $region16: #{tpu_custom_call.1} parent=11 // pred_fallthru
          _
        // Predicated region
        $region17: #{tpu_custom_call.1} parent=11 // pred_check
          %p182 = pneg %p86
        $region18: #{tpu_custom_call.1} parent=11 // pred_check_branch
          %184 = sbr.rel (%p182) target = $region20
        $region19: #{tpu_custom_call.1} parent=11 // pred_region
          _
        $region20: #{tpu_custom_call.1} parent=11 // pred_fallthru
          _
        // Predicated region
        $region21: #{tpu_custom_call.1} parent=11 // pred_check
          %p185 = pneg %p107
        $region22: #{tpu_custom_call.1} parent=11 // pred_check_branch
          %187 = sbr.rel (%p185) target = $region24
        $region23: #{tpu_custom_call.1} parent=11 // pred_region
          %s189 = ssub.s32 1024, 1024
          %190 = vsyncadd [#allocation6], %s189
          %s191 = sshll.u32 [#allocation7], 4
          %s192 = int_to_ptr.vmem [resolvable:$true] %s191
          %197 = dma.hbm_to_vmem [thread:$0]  %s3, 1024, %s192, [#allocation6], 128, 128, 8
        $region24: #{tpu_custom_call.1} parent=11 // pred_fallthru
          _
        // Predicated region
        $region25: #{tpu_custom_call.1} parent=11 // pred_check
          %p198 = pneg %p128
        $region26: #{tpu_custom_call.1} parent=11 // pred_check_branch
          %200 = sbr.rel (%p198) target = $region28
        $region27: #{tpu_custom_call.1} parent=11 // pred_region
          _
        $region28: #{tpu_custom_call.1} parent=11 // pred_fallthru
          _
      $region12: #{tpu_custom_call.1} parent=5 // pred_fallthru
        _
      %p201 = scmp.lt.s32.totalorder %s18, 2
      // Predicated region
      $region29: #{tpu_custom_call.1} parent=5 // pred_check
        %p202 = pneg %p201
      $region30: #{tpu_custom_call.1} parent=5 // pred_check_branch
        %204 = sbr.rel (%p202) target = $region32
      $region31: #{tpu_custom_call.1} parent=5 // pred_region
        // Predicated region
        $region33: #{tpu_custom_call.1} parent=31 // pred_check
          %p205 = pneg %p38
        $region34: #{tpu_custom_call.1} parent=31 // pred_check_branch
          %207 = sbr.rel (%p205) target = $region36
        $region35: #{tpu_custom_call.1} parent=31 // pred_region
          %s208 = sand.u32 %s28, 1
          %s209 = scalar_lea.sflag [#allocation3], %s208
          %s210 = sand.u32 %s28, 1
          %s211 = smul.addr %s210, 16
          %s212 = scalar_lea.vmem [#allocation2], %s211
          %s213 = smul.u32 2, %s18
          %s214 = ssub.s32 3, %s213
          %p215 = scmp.lt.s32.totalorder %s214, 2
          %s216 = scalar_select %p215, %s214, 2
          %s217 = smul.u32 128, %s216
          %s219 = ssub.s32 256, %s217
          %220 = vsyncadd %s209, %s219
          %p221 = scmp.ne.s32.totalorder 0, %s217
          %s222 = smul.addr %s213, 128
          %s223 = scalar_lea.hbm %s0, %s222
          %s224 = smul.u32 8, %s216
          %s225 = sshll.u32 %s212, 4
          %s226 = int_to_ptr.vmem [resolvable:$true] %s225
          %s227 = sshll.u32 %s224, 4
          %231 = dma.hbm_to_vmem [thread:$0]  (%p221), %s223, %s227, %s226, %s209, 128, 128, 8
        $region36: #{tpu_custom_call.1} parent=31 // pred_fallthru
          _
      $region32: #{tpu_custom_call.1} parent=5 // pred_fallthru
        _
      %p232 = scmp.le.s32.totalorder 1, %s18
      %p233 = scmp.lt.s32.totalorder %s18, 3
      %p234 = pnand %p232, %p233
      %p235 = pneg %p234
      // Predicated region
      $region37: #{tpu_custom_call.1} parent=5 // pred_check
        _
      $region38: #{tpu_custom_call.1} parent=5 // pred_check_branch
        %237 = sbr.rel (%p234) target = $region40
      $region39: #{tpu_custom_call.1} parent=5 // pred_region
        %s238 = ssub.s32 %s18, 1
        %s239 = sand.u32 %s31, 1
        %s240 = scalar_lea.sflag [#allocation3], %s239
        %s241 = sand.u32 %s31, 1
        %s242 = smul.addr %s241, 16
        %s243 = scalar_lea.vmem [#allocation2], %s242
        // Predicated region
        $region41: #{tpu_custom_call.1} parent=39 // pred_check
          %p244 = pneg %p44
        $region42: #{tpu_custom_call.1} parent=39 // pred_check_branch
          %246 = sbr.rel (%p244) target = $region44
        $region43: #{tpu_custom_call.1} parent=39 // pred_region
          %247 = dma.done %s240, 256
        $region44: #{tpu_custom_call.1} parent=39 // pred_fallthru
          _
        // Predicated region
        $region45: #{tpu_custom_call.1} parent=39 // pred_check
          %p248 = pneg %p65
        $region46: #{tpu_custom_call.1} parent=39 // pred_check_branch
          %250 = sbr.rel (%p248) target = $region48
        $region47: #{tpu_custom_call.1} parent=39 // pred_region
          %251 = dma.done [#allocation6], 512
        $region48: #{tpu_custom_call.1} parent=39 // pred_fallthru
          _
        // Predicated region
        $region49: #{tpu_custom_call.1} parent=39 // pred_check
          %p252 = pneg %p107
        $region50: #{tpu_custom_call.1} parent=39 // pred_check_branch
          %254 = sbr.rel (%p252) target = $region52
        $region51: #{tpu_custom_call.1} parent=39 // pred_region
          %255 = dma.done [#allocation6], 1024
        $region52: #{tpu_custom_call.1} parent=39 // pred_fallthru
          _
        %s256 = sand.u32 %s31, 1
        %s257 = scalar_lea.sflag [#allocation3], %s256
        %s258 = sand.u32 %s31, 1
        %s259 = smul.addr %s258, 16
        %s260 = scalar_lea.vmem [#allocation2], %s259
        %p261 = pneg %p44
        %p262 = pneg %p41
        %p263 = pneg %p65
        %p264 = pneg %p62
        %p265 = pneg %p86
        %p266 = pneg %p83
        %p267 = pneg %p107
        %p268 = pneg %p104
        %p269 = pneg %p128
        %p270 = pneg %p125
        %p271 = pneg %p154
        %p272 = pneg %p151
        %s273 = sand.u32 %s141, 1
        %s274 = scalar_lea.sflag [#allocation4], %s273
        %s275 = sand.u32 %s141, 1
        %s276 = smul.addr %s275, 16
        %s277 = scalar_lea.vmem [#allocation8], %s276
        %s278 = smul.u32 2, %s23
        %s279 = ssub.s32 3, %s278
        %p280 = scmp.lt.s32.totalorder %s279, 2
        %s281 = scalar_select %p280, %s279, 2
        %s282 = smul.u32 128, %s281
        %s283 = smul.u32 2, %s23
        %s284 = ssub.s32 3, %s283
        %p285 = scmp.lt.s32.totalorder %s284, 2
        %s286 = scalar_select %p285, %s284, 2
        %s287 = smul.u32 128, %s286
        %v288 = vld [vmem:[%s243] sm:$0xff]
        %v289 = vld [vmem:[%s243 + $0x8] sm:$0xff]
        %v290 = vld [vmem:[#allocation5] sm:$0xff]
        %v291 = vld [vmem:[#allocation5 + $0x8] sm:$0xff]
        %v292 = vld [vmem:[#allocation5 + $0x10] sm:$0xff]
        %v293 = vld [vmem:[#allocation5 + $0x18] sm:$0xff]
        %v294 = vld [vmem:[%s2] sm:$0x1]
        %v296 = vlaneseq
        %v297 = vshrl.u32 %v296, 7
        %v298 = vsub.s32 0, %v297
        %v299 = vrot.slane %v294, %v298
        %vm301 = vcmask 261120
        %v303 = vsel %vm301, %v288, 0
        %v306 = vsel %vm301, %v289, 0
        %308 = vmatprep.subr.mxu0 0.0
        %309 = vmatpush1.msra.mxu0 %v290
        %310 = vmatprep.subr.mxu0 0.0
        %311 = vmatpush1.msra.mxu0 %v291
        %312 = vmatprep.subr.mxu0 0.0
        %313 = vmatpush1.msra.mxu0 %v292
        %314 = vmatprep.subr.mxu0 0.0
        %315 = vmatpush1.msra.mxu0 %v293
        %316 = vmatprep.subr.mxu0 0.0
        %317 = vmatpush1.msra.mxu0 0.0
        %318 = vmatprep.subr.mxu0 0.0
        %319 = vmatpush1.msra.mxu0 0.0
        %320 = vmatprep.subr.mxu0 0.0
        %321 = vmatpush1.msra.mxu0 0.0
        %322 = vmatprep.subr.mxu0 0.0
        %323 = vmatpush1.msra.mxu0 0.0
        %324 = vmatprep.subr.mxu0 0.0
        %325 = vmatpush1.msra.mxu0 0.0
        %326 = vmatprep.subr.mxu0 0.0
        %327 = vmatpush1.msra.mxu0 0.0
        %328 = vmatprep.subr.mxu0 0.0
        %329 = vmatpush1.msra.mxu0 0.0
        %330 = vmatprep.subr.mxu0 0.0
        %331 = vmatpush1.msra.mxu0 0.0
        %332 = vmatprep.subr.mxu0 0.0
        %333 = vmatpush1.msra.mxu0 0.0
        %334 = vmatprep.subr.mxu0 0.0
        %335 = vmatpush1.msra.mxu0 0.0
        %336 = vmatprep.subr.mxu0 0.0
        %337 = vmatpush1.msra.mxu0 0.0
        %338 = vmatprep.subr.mxu0 0.0
        %339 = vmatpush1.msra.mxu0 0.0
        %340 = vmatprep.subr.mxu0 0.0
        %341 = vmatpush1.msra.mxu0 0.0
        %342 = vmatprep.subr.mxu0 0.0
        %343 = vmatpush1.msra.mxu0 0.0
        %344 = vmatprep.subr.mxu0 0.0
        %345 = vmatpush1.msra.mxu0 0.0
        %346 = vmatprep.subr.mxu0 0.0
        %347 = vmatpush1.msra.mxu0 0.0
        %348 = vmatprep.subr.mxu0 0.0
        %349 = vmatpush1.msra.mxu0 0.0
        %350 = vmatprep.subr.mxu0 0.0
        %351 = vmatpush1.msra.mxu0 0.0
        %352 = vmatprep.subr.mxu0 0.0
        %353 = vmatpush1.msra.mxu0 0.0
        %354 = vmatprep.subr.mxu0 0.0
        %355 = vmatpush1.msra.mxu0 0.0
        %356 = vmatprep.subr.mxu0 0.0
        %357 = vmatpush1.msra.mxu0 0.0
        %358 = vmatprep.subr.mxu0 0.0
        %359 = vmatpush1.msra.mxu0 0.0
        %360 = vmatprep.subr.mxu0 0.0
        %361 = vmatpush1.msra.mxu0 0.0
        %362 = vmatprep.subr.mxu0 0.0
        %363 = vmatpush1.msra.mxu0 0.0
        %364 = vmatprep.subr.mxu0 0.0
        %365 = vmatpush1.msra.mxu0 0.0
        %366 = vmatprep.subr.mxu0 0.0
        %367 = vmatpush1.msra.mxu0 0.0
        %368 = vmatprep.subr.mxu0 0.0
        %369 = vmatpush1.msra.mxu0 0.0
        %370 = vmatprep.subr.mxu0 0.0
        %371 = vmatpush1.msra.mxu0 0.0
        %372 = vmatprep.mubr.f32.mxu0 0.0
        %373 = vmatmul.mubr.f32.gmra.mrb[0].mxu0 %v303
        %v374 = vpop.f32.mrb[0].mxu0
        %v375 = vadd.f32 %v299, %v374
        %v376 = vpop.f32.mrb[0].mxu0
        %377 = vmatprep.mubr.f32.mxu0 0.0
        %378 = vmatmul.mubr.f32.gmra.mrb[0].mxu0 %v306
        %v379 = vpop.f32.mrb[0].mxu0
        %v380 = vadd.f32 %v299, %v379
        %v381 = vpop.f32.mrb[0].mxu0
        %382 = vdwg.mxu0
        %vm383 = vcmp.gt.f32.partialorder %v375, 0.0
        %vm384 = vcmp.gt.f32.partialorder %v380, 0.0
        %v385 = vmul.f32 %v375, 0.01
        %v386 = vmul.f32 %v380, 0.01
        %v387 = vsel %vm383, %v375, %v385
        %v388 = vsel %vm384, %v380, %v386
        %v389 = vld [vmem:[#allocation7] sm:$0xff]
        %v390 = vld [vmem:[#allocation7 + $0x8] sm:$0xff]
        %v391 = vld [vmem:[#allocation7 + $0x10] sm:$0xff]
        %v392 = vld [vmem:[#allocation7 + $0x18] sm:$0xff]
        %v393 = vld [vmem:[#allocation7 + $0x20] sm:$0xff]
        %v394 = vld [vmem:[#allocation7 + $0x28] sm:$0xff]
        %v395 = vld [vmem:[#allocation7 + $0x30] sm:$0xff]
        %v396 = vld [vmem:[#allocation7 + $0x38] sm:$0xff]
        %v397 = vld [vmem:[%s4] sm:$0x1]
        %v399 = vlaneseq
        %v400 = vshrl.u32 %v399, 7
        %v401 = vsub.s32 0, %v400
        %v402 = vrot.slane %v397, %v401
        %vm404 = vcmask 523264
        %v406 = vsel %vm404, %v387, 0
        %v409 = vsel %vm404, %v388, 0
        %411 = vmatprep.subr.mxu0 0.0
        %412 = vmatpush1.msra.mxu0 %v389
        %413 = vmatprep.subr.mxu0 0.0
        %414 = vmatpush1.msra.mxu0 %v390
        %415 = vmatprep.subr.mxu0 0.0
        %416 = vmatpush1.msra.mxu0 %v391
        %417 = vmatprep.subr.mxu0 0.0
        %418 = vmatpush1.msra.mxu0 %v392
        %419 = vmatprep.subr.mxu0 0.0
        %420 = vmatpush1.msra.mxu0 %v393
        %421 = vmatprep.subr.mxu0 0.0
        %422 = vmatpush1.msra.mxu0 %v394
        %423 = vmatprep.subr.mxu0 0.0
        %424 = vmatpush1.msra.mxu0 %v395
        %425 = vmatprep.subr.mxu0 0.0
        %426 = vmatpush1.msra.mxu0 %v396
        %427 = vmatprep.subr.mxu0 0.0
        %428 = vmatpush1.msra.mxu0 0.0
        %429 = vmatprep.subr.mxu0 0.0
        %430 = vmatpush1.msra.mxu0 0.0
        %431 = vmatprep.subr.mxu0 0.0
        %432 = vmatpush1.msra.mxu0 0.0
        %433 = vmatprep.subr.mxu0 0.0
        %434 = vmatpush1.msra.mxu0 0.0
        %435 = vmatprep.subr.mxu0 0.0
        %436 = vmatpush1.msra.mxu0 0.0
        %437 = vmatprep.subr.mxu0 0.0
        %438 = vmatpush1.msra.mxu0 0.0
        %439 = vmatprep.subr.mxu0 0.0
        %440 = vmatpush1.msra.mxu0 0.0
        %441 = vmatprep.subr.mxu0 0.0
        %442 = vmatpush1.msra.mxu0 0.0
        %443 = vmatprep.subr.mxu0 0.0
        %444 = vmatpush1.msra.mxu0 0.0
        %445 = vmatprep.subr.mxu0 0.0
        %446 = vmatpush1.msra.mxu0 0.0
        %447 = vmatprep.subr.mxu0 0.0
        %448 = vmatpush1.msra.mxu0 0.0
        %449 = vmatprep.subr.mxu0 0.0
        %450 = vmatpush1.msra.mxu0 0.0
        %451 = vmatprep.subr.mxu0 0.0
        %452 = vmatpush1.msra.mxu0 0.0
        %453 = vmatprep.subr.mxu0 0.0
        %454 = vmatpush1.msra.mxu0 0.0
        %455 = vmatprep.subr.mxu0 0.0
        %456 = vmatpush1.msra.mxu0 0.0
        %457 = vmatprep.subr.mxu0 0.0
        %458 = vmatpush1.msra.mxu0 0.0
        %459 = vmatprep.subr.mxu0 0.0
        %460 = vmatpush1.msra.mxu0 0.0
        %461 = vmatprep.subr.mxu0 0.0
        %462 = vmatpush1.msra.mxu0 0.0
        %463 = vmatprep.subr.mxu0 0.0
        %464 = vmatpush1.msra.mxu0 0.0
        %465 = vmatprep.subr.mxu0 0.0
        %466 = vmatpush1.msra.mxu0 0.0
        %467 = vmatprep.subr.mxu0 0.0
        %468 = vmatpush1.msra.mxu0 0.0
        %469 = vmatprep.subr.mxu0 0.0
        %470 = vmatpush1.msra.mxu0 0.0
        %471 = vmatprep.subr.mxu0 0.0
        %472 = vmatpush1.msra.mxu0 0.0
        %473 = vmatprep.subr.mxu0 0.0
        %474 = vmatpush1.msra.mxu0 0.0
        %475 = vmatprep.mubr.f32.mxu0 0.0
        %476 = vmatmul.mubr.f32.gmra.mrb[0].mxu0 %v406
        %v477 = vpop.f32.mrb[0].mxu0
        %v478 = vadd.f32 %v402, %v477
        %v479 = vpop.f32.mrb[0].mxu0
        %480 = vmatprep.mubr.f32.mxu0 0.0
        %481 = vmatmul.mubr.f32.gmra.mrb[0].mxu0 %v409
        %v482 = vpop.f32.mrb[0].mxu0
        %v483 = vadd.f32 %v402, %v482
        %v484 = vpop.f32.mrb[0].mxu0
        %485 = vdwg.mxu0
        %vm486 = vcmp.gt.f32.partialorder %v478, 0.0
        %vm487 = vcmp.gt.f32.partialorder %v483, 0.0
        %v488 = vmul.f32 %v478, 0.01
        %v489 = vmul.f32 %v483, 0.01
        %v490 = vsel %vm486, %v478, %v488
        %v491 = vsel %vm487, %v483, %v489
        %492 = vst [vmem:[%s277] sm:$0xff] %v490
        %493 = vst [vmem:[%s277 + $0x8] sm:$0xff] %v491
        %s494 = sand.u32 %s141, 1
        %s495 = scalar_lea.sflag [#allocation4], %s494
        %s496 = sand.u32 %s141, 1
        %s497 = smul.addr %s496, 16
        %s498 = scalar_lea.vmem [#allocation8], %s497
        // Predicated region
        $region53: #{tpu_custom_call.1} parent=39 // pred_check
          %p499 = pneg %p151
        $region54: #{tpu_custom_call.1} parent=39 // pred_check_branch
          %501 = sbr.rel (%p499) target = $region56
        $region55: #{tpu_custom_call.1} parent=39 // pred_region
          %s502 = smul.u32 2, %s23
          %s503 = ssub.s32 3, %s502
          %p504 = scmp.lt.s32.totalorder %s503, 2
          %s505 = scalar_select %p504, %s503, 2
          %s506 = smul.u32 128, %s505
          %s508 = ssub.s32 256, %s506
          %509 = vsyncadd %s495, %s508
          %p510 = scmp.ne.s32.totalorder 0, %s506
          %s511 = smul.addr %s502, 128
          %s512 = scalar_lea.hbm %s5, %s511
          %s513 = smul.u32 8, %s505
          %s514 = sshll.u32 %s498, 4
          %s515 = int_to_ptr.vmem [resolvable:$true] %s514
          %s516 = sshll.u32 %s513, 4
          %520 = dma.vmem_to_hbm [thread:$0]  (%p510), %s515, %s516, %s512, %s495, 128, 128, 8
        $region56: #{tpu_custom_call.1} parent=39 // pred_fallthru
          _
      $region40: #{tpu_custom_call.1} parent=5 // pred_fallthru
        _
      %p521 = scmp.le.s32.totalorder 2, %s18
      // Predicated region
      $region57: #{tpu_custom_call.1} parent=5 // pred_check
        %p522 = pneg %p521
      $region58: #{tpu_custom_call.1} parent=5 // pred_check_branch
        %524 = sbr.rel (%p522) target = $region60
      $region59: #{tpu_custom_call.1} parent=5 // pred_region
        %s525 = ssub.s32 %s18, 2
        // Predicated region
        $region61: #{tpu_custom_call.1} parent=59 // pred_check
          %p526 = pneg %p157
        $region62: #{tpu_custom_call.1} parent=59 // pred_check_branch
          %528 = sbr.rel (%p526) target = $region64
        $region63: #{tpu_custom_call.1} parent=59 // pred_region
          %s529 = sand.u32 %s142, 1
          %s530 = scalar_lea.sflag [#allocation4], %s529
          %s531 = sand.u32 %s142, 1
          %s532 = smul.addr %s531, 16
          %s533 = scalar_lea.vmem [#allocation8], %s532
          %534 = dma.done %s530, 256
        $region64: #{tpu_custom_call.1} parent=59 // pred_fallthru
          _
      $region60: #{tpu_custom_call.1} parent=5 // pred_fallthru
        _
    $region6: #{tpu_custom_call.1} parent=1 // loop_footer
      %s22 = sadd.s32 1, %s18
    $region7: #{tpu_custom_call.1} parent=1 // loop_footer_branch
      %17 = sbr.rel target = $region3
    $region8: #{tpu_custom_call.1} parent=1 // loop_exit
      _
    %535 = vsyncpa [#allocation3], 1
    %s536 = scalar_lea.sflag [#allocation3], 1
    %537 = vsyncpa %s536, 1
    %538 = vsyncpa [#allocation6], 1
    %539 = vsyncpa [#allocation4], 1
    %s540 = scalar_lea.sflag [#allocation4], 1
    %541 = vsyncpa %s540, 1

</llo_original>
